<compile_context>
chip_gen: v7x
topology: tpu7x:2x2x1
jax: 0.10.0
libtpu: 0.0.40
codegen_flags: <defaults>
</compile_context>

<pallas_src>
import jax
import jax.numpy as jnp
from jax.experimental import pallas as pl
from jax.experimental.pallas import tpu as pltpu


def _round_up(x: int, m: int) -> int:
    return ((x + m - 1) // m) * m


def value_net_kernel(obs_ref, w1_ref, b1_ref, w2_ref, b2_ref, out_ref):
    # fc1 on the MXU: (TB, obs_dim) @ (obs_dim, hidden) -> (TB, hidden), f32 accumulate.
    h = jnp.dot(obs_ref[...], w1_ref[...], preferred_element_type=jnp.float32)
    h = jnp.maximum(h + b1_ref[...], 0.0)            # bias + ReLU on the VPU
    # fc2 (N=1): elementwise multiply by the w2 row (VPU) + lane reduce (XLU).
    v = jnp.sum(h * w2_ref[...], axis=-1)            # (TB,)
    v = v + b2_ref[0, 0]                             # scalar bias from SMEM
    out_ref[0, 0, :] = v.astype(out_ref.dtype)       # lane-dense store


def value_net_forward(obs, w1, b1, w2, b2, *, block_batch=512):
    """obs: (B, obs_dim) f32; weights stored (in, out); returns (B, 1) f32."""
    B, obs_dim = obs.shape
    hidden = w1.shape[1]

    # Batch tile: multiple of 128 (lane-dense output rows), capped at block_batch.
    tb = _round_up(min(block_batch, _round_up(B, 128)), 128)
    num_tiles = pl.cdiv(B, tb)
    b_pad = num_tiles * tb

    obs_p = obs if b_pad == B else jnp.pad(obs, ((0, b_pad - B), (0, 0)))
    w2_row = w2.reshape(1, hidden)     # (hidden, 1) -> (1, hidden) broadcast row
    b2_s = b2.reshape(1, 1)

    cost = pl.CostEstimate(
        flops=2 * b_pad * obs_dim * hidden + 3 * b_pad * hidden,
        transcendentals=0,
        bytes_accessed=4 * (obs_p.size + w1.size + b1.size + w2.size + 1 + b_pad),
    )

    out = pl.pallas_call(
        value_net_kernel,
        out_shape=jax.ShapeDtypeStruct((num_tiles, 1, tb), jnp.float32),
        grid_spec=pltpu.PrefetchScalarGridSpec(
            num_scalar_prefetch=0,
            grid=(num_tiles,),
            in_specs=[
                pl.BlockSpec((tb, obs_dim), lambda i: (i, 0)),       # obs tile (pipelined)
                pl.BlockSpec((obs_dim, hidden), lambda i: (0, 0)),   # w1: VMEM resident
                pl.BlockSpec((1, hidden), lambda i: (0, 0)),         # b1: VMEM resident
                pl.BlockSpec((1, hidden), lambda i: (0, 0)),         # w2 row: VMEM resident
                pl.BlockSpec(memory_space=pltpu.MemorySpace.SMEM),   # b2 scalar in SMEM
            ],
            out_specs=pl.BlockSpec((1, 1, tb), lambda i: (i, 0, 0)),  # lane-dense output
        ),
        compiler_params=pltpu.CompilerParams(
            dimension_semantics=("parallel",)),
        cost_estimate=cost,
    )(obs_p, w1, b1, w2_row, b2_s)

    # (num_tiles, 1, tb) -> (b_pad, 1) -> trim padding rows.
    return out.reshape(b_pad, 1)[:B]


def init_value_net_params(key, obs_dim, hidden_dim):
    """Deterministic init mimicking PyTorch nn.Linear default U[-1/sqrt(fan_in), 1/sqrt(fan_in)]."""
    k1, k2, k3, k4 = jax.random.split(key, 4)
    bound1 = 1.0 / jnp.sqrt(jnp.float32(obs_dim))
    bound2 = 1.0 / jnp.sqrt(jnp.float32(hidden_dim))
    # Stored as (in, out) so the kernel computes x @ W (same math as PyTorch x @ W.T).
    w1 = jax.random.uniform(k1, (obs_dim, hidden_dim), jnp.float32, -bound1, bound1)
    b1 = jax.random.uniform(k2, (1, hidden_dim), jnp.float32, -bound1, bound1)
    w2 = jax.random.uniform(k3, (hidden_dim, 1), jnp.float32, -bound2, bound2)
    b2 = jax.random.uniform(k4, (1, 1), jnp.float32, -bound2, bound2)
    return w1, b1, w2, b2


if __name__ == "__main__":
    key = jax.random.PRNGKey(0)
    k_obs, k_params, k_obs2 = jax.random.split(key, 3)

    batch, obs_dim, hidden_dim = 8, 16, 32
    obs = jax.random.normal(k_obs, (batch, obs_dim), dtype=jnp.float32)
    w1, b1, w2, b2 = init_value_net_params(k_params, obs_dim, hidden_dim)

    # Small-batch path (single tile, padded to 128 rows).
    out = jax.block_until_ready(value_net_forward(obs, w1, b1, w2, b2))
    ref = jnp.maximum(obs @ w1 + b1, 0.0) @ w2 + b2
    assert out.shape == (batch, 1)
    assert jnp.allclose(out, ref, atol=1e-5, rtol=1e-4)

    # Multi-tile path (num_tiles > 1) to exercise the batch-tiled, parallel grid.
    batch2 = 300
    obs2 = jax.random.normal(k_obs2, (batch2, obs_dim), dtype=jnp.float32)
    out2 = jax.block_until_ready(
        value_net_forward(obs2, w1, b1, w2, b2, block_batch=128))
    ref2 = jnp.maximum(obs2 @ w1 + b1, 0.0) @ w2 + b2
    assert out2.shape == (batch2, 1)
    assert jnp.allclose(out2, ref2, atol=1e-5, rtol=1e-4)

    print("KERNEL_OK")
</pallas_src>

<mosaic_0001>
module attributes {stable_mosaic.version = 11 : i64} {
  func.func @value_net_kernel(%arg0: i32, %arg1: memref<128x16xf32, #tpu.memory_space<vmem>>, %arg2: memref<16x32xf32, #tpu.memory_space<vmem>>, %arg3: memref<1x32xf32, #tpu.memory_space<vmem>>, %arg4: memref<1x32xf32, #tpu.memory_space<vmem>>, %arg5: memref<1x1xf32, #tpu.memory_space<smem>>, %arg6: memref<1x1x128xf32, #tpu.memory_space<vmem>>) attributes {dimension_semantics = [#tpu.dimension_semantics<parallel>], iteration_bounds = array<i64: 1>, scalar_prefetch = 0 : i64, scratch_operands = 0 : i64, tpu.core_type = #tpu.core_type<tc>, window_params = [{transform_indices = @transform_0, window_bounds = array<i64: 128, 16>}, {pipeline_mode = #tpu.pipeline_mode<synchronous>, transform_indices = @transform_1, window_bounds = array<i64: 16, 32>}, {pipeline_mode = #tpu.pipeline_mode<synchronous>, transform_indices = @transform_2, window_bounds = array<i64: 1, 32>}, {pipeline_mode = #tpu.pipeline_mode<synchronous>, transform_indices = @transform_3, window_bounds = array<i64: 1, 32>}, {transform_indices = @transform_4, window_bounds = array<i64: 1, 1>}, {transform_indices = @transform_5, window_bounds = array<i64: 1, 1, 128>}]} {
    %c0 = arith.constant 0 : index
    %c0_0 = arith.constant 0 : index
    %0 = vector.load %arg1[%c0, %c0_0] : memref<128x16xf32, #tpu.memory_space<vmem>>, vector<128x16xf32>
    %c0_1 = arith.constant 0 : index
    %c0_2 = arith.constant 0 : index
    %1 = vector.load %arg2[%c0_1, %c0_2] : memref<16x32xf32, #tpu.memory_space<vmem>>, vector<16x32xf32>
    %cst = arith.constant dense<0.000000e+00> : vector<128x32xf32>
    %2 = tpu.matmul %0, %1, %cst {dimension_numbers = #tpu.dot_dimension_numbers<[1], [0], [0], [1], [0, 0, 1, 1], [], []>} : vector<128x16xf32>, vector<16x32xf32>, vector<128x32xf32> -> vector<128x32xf32>
    %c0_3 = arith.constant 0 : index
    %c0_4 = arith.constant 0 : index
    %3 = vector.load %arg3[%c0_3, %c0_4] : memref<1x32xf32, #tpu.memory_space<vmem>>, vector<1x32xf32>
    %4 = vector.broadcast %3 : vector<1x32xf32> to vector<128x32xf32>
    %5 = arith.addf %2, %4 : vector<128x32xf32>
    %cst_5 = arith.constant 0.000000e+00 : f32
    %6 = vector.broadcast %cst_5 : f32 to vector<128x32xf32>
    %7 = arith.maximumf %5, %6 : vector<128x32xf32>
    %c0_6 = arith.constant 0 : index
    %c0_7 = arith.constant 0 : index
    %8 = vector.load %arg4[%c0_6, %c0_7] : memref<1x32xf32, #tpu.memory_space<vmem>>, vector<1x32xf32>
    %9 = vector.broadcast %8 : vector<1x32xf32> to vector<128x32xf32>
    %10 = arith.mulf %7, %9 : vector<128x32xf32>
    %cst_8 = arith.constant dense<0.000000e+00> : vector<128xf32>
    %11 = vector.multi_reduction <add>, %10, %cst_8 [1] : vector<128x32xf32> to vector<128xf32>
    %c0_9 = arith.constant 0 : index
    %c0_10 = arith.constant 0 : index
    %12 = memref.load %arg5[%c0_9, %c0_10] : memref<1x1xf32, #tpu.memory_space<smem>>
    %13 = vector.broadcast %12 : f32 to vector<128xf32>
    %14 = arith.addf %11, %13 : vector<128xf32>
    %c0_11 = arith.constant 0 : index
    %c0_12 = arith.constant 0 : index
    %c0_13 = arith.constant 0 : index
    %15 = vector.load %arg6[%c0_11, %c0_12, %c0_13] : memref<1x1x128xf32, #tpu.memory_space<vmem>>, vector<1x1x128xf32>
    %16 = vector.shape_cast %15 : vector<1x1x128xf32> to vector<128xf32>
    %17 = vector.shape_cast %14 : vector<128xf32> to vector<1x1x128xf32>
    tpu.vector_store %arg6[%c0_11, %c0_12, %c0_13], %17 {strides = array<i32>} : memref<1x1x128xf32, #tpu.memory_space<vmem>>, vector<1x1x128xf32>,
    return
  }
  func.func @transform_0(%arg0: i32) -> (i32, i32) {
    %c0_i32 = arith.constant 0 : i32
    %c0_i32_0 = arith.constant 0 : i32
    return %arg0, %c0_i32 : i32, i32
  }
  func.func @transform_1(%arg0: i32) -> (i32, i32) {
    %c0_i32 = arith.constant 0 : i32
    %c0_i32_0 = arith.constant 0 : i32
    %c0_i32_1 = arith.constant 0 : i32
    return %c0_i32, %c0_i32_0 : i32, i32
  }
  func.func @transform_2(%arg0: i32) -> (i32, i32) {
    %c0_i32 = arith.constant 0 : i32
    %c0_i32_0 = arith.constant 0 : i32
    %c0_i32_1 = arith.constant 0 : i32
    return %c0_i32, %c0_i32_0 : i32, i32
  }
  func.func @transform_3(%arg0: i32) -> (i32, i32) {
    %c0_i32 = arith.constant 0 : i32
    %c0_i32_0 = arith.constant 0 : i32
    %c0_i32_1 = arith.constant 0 : i32
    return %c0_i32, %c0_i32_0 : i32, i32
  }
  func.func @transform_4(%arg0: i32) -> (i32, i32) {
    %c0_i32 = arith.constant 0 : i32
    %c0_i32_0 = arith.constant 0 : i32
    %c0_i32_1 = arith.constant 0 : i32
    return %c0_i32, %c0_i32_0 : i32, i32
  }
  func.func @transform_5(%arg0: i32) -> (i32, i32, i32) {
    %c0_i32 = arith.constant 0 : i32
    %c0_i32_0 = arith.constant 0 : i32
    %c0_i32_1 = arith.constant 0 : i32
    return %arg0, %c0_i32, %c0_i32_0 : i32, i32, i32
  }
}

</mosaic_0001>

<llo_original>
// kernel: tpu_custom_call.1
$region0: #{tpu_custom_call.1}
  #allocation0 [shape = 'u32[]', space=smem, size = 0x4, offset = 0x4, fixed_abs, tag = 'smem constant byte address 0x4 - core index']
  #allocation1 [shape = 'u32[144,128]{1,0:T(1,128)}', space=vmem, size = 0x12000, scoped, tag = 'internal scratch']
  #allocation2 [shape = 'f32[1,1]{1,0:T(1,128)S(6)}', space=smem, size = 0x200, scoped, tag = 'scoped memory for tpu_custom_call.1']
  %s0 = inlined_call_operand.vmem [shape: f32[128,16], index: 0, kind: input, shape index: {}]
  %s1 = inlined_call_operand.vmem [shape: f32[16,32], index: 1, kind: input, shape index: {}]
  %s2 = inlined_call_operand.vmem [shape: f32[1,32], index: 2, kind: input, shape index: {}]
  %s3 = inlined_call_operand.vmem [shape: f32[1,32], index: 3, kind: input, shape index: {}]
  %s4 = inlined_call_operand.<no memory space> [shape: f32[1,1], index: 4, kind: input, shape index: {}]
  %s5 = inlined_call_operand.hbm [shape: f32[1,1,128], index: 5, kind: output, shape index: {}]
  %s6 = sld [smem:[#allocation0]]
  $region30: #{tpu_custom_call.1} parent=0
    _
  %s8 = ssub.s32 1, %s6
  %s9 = scalar_select 0, %s8, %s6
  %10 = sst [smem:[#allocation2]] %s4
  $region1: #{tpu_custom_call.1} parent=0
    #allocation3 [shape = 'u8[512]{0}', space=vmem, size = 0x400, scoped, tag = 'output window, operand 0, single buffered']
    #allocation4 [shape = 's32[1]{0}', space=sflag, size = 0x4, scoped, tag = 'scoped memory for tpu_custom_call.1']
    %11 = vsyncpa [#allocation4], 0
    // Predicated region
    $region2: #{tpu_custom_call.1} parent=1 // pred_check
      _
    $region3: #{tpu_custom_call.1} parent=1 // pred_check_branch
      %13 = sbr.rel (0) target = $region5
    $region4: #{tpu_custom_call.1} parent=1 // pred_region
      _
    $region5: #{tpu_custom_call.1} parent=1 // pred_fallthru
      _
    // Predicated region
    $region6: #{tpu_custom_call.1} parent=1 // pred_check
      _
    $region7: #{tpu_custom_call.1} parent=1 // pred_check_branch
      %15 = sbr.rel (0) target = $region9
    $region8: #{tpu_custom_call.1} parent=1 // pred_region
      _
    $region9: #{tpu_custom_call.1} parent=1 // pred_fallthru
      _
    // Predicated region
    $region10: #{tpu_custom_call.1} parent=1 // pred_check
      _
    $region11: #{tpu_custom_call.1} parent=1 // pred_check_branch
      %17 = sbr.rel (0) target = $region13
    $region12: #{tpu_custom_call.1} parent=1 // pred_region
      _
    $region13: #{tpu_custom_call.1} parent=1 // pred_fallthru
      _
    // Predicated region
    $region14: #{tpu_custom_call.1} parent=1 // pred_check
      _
    $region15: #{tpu_custom_call.1} parent=1 // pred_check_branch
      %19 = sbr.rel (0) target = $region17
    $region16: #{tpu_custom_call.1} parent=1 // pred_region
      _
    $region17: #{tpu_custom_call.1} parent=1 // pred_fallthru
      _
    // Predicated region
    $region18: #{tpu_custom_call.1} parent=1 // pred_check
      _
    $region19: #{tpu_custom_call.1} parent=1 // pred_check_branch
      %21 = sbr.rel (0) target = $region21
    $region20: #{tpu_custom_call.1} parent=1 // pred_region
      _
    $region21: #{tpu_custom_call.1} parent=1 // pred_fallthru
      _
    %v22 = vld [vmem:[%s0] sm:$0xff]
    %v23 = vld [vmem:[%s0 + $0x8] sm:$0xff]
    %v24 = vld [vmem:[%s0 + $0x10] sm:$0xff]
    %v25 = vld [vmem:[%s0 + $0x18] sm:$0xff]
    %v26 = vld [vmem:[%s0 + $0x20] sm:$0xff]
    %v27 = vld [vmem:[%s0 + $0x28] sm:$0xff]
    %v28 = vld [vmem:[%s0 + $0x30] sm:$0xff]
    %v29 = vld [vmem:[%s0 + $0x38] sm:$0xff]
    %v30 = vld [vmem:[%s0 + $0x40] sm:$0xff]
    %v31 = vld [vmem:[%s0 + $0x48] sm:$0xff]
    %v32 = vld [vmem:[%s0 + $0x50] sm:$0xff]
    %v33 = vld [vmem:[%s0 + $0x58] sm:$0xff]
    %v34 = vld [vmem:[%s0 + $0x60] sm:$0xff]
    %v35 = vld [vmem:[%s0 + $0x68] sm:$0xff]
    %v36 = vld [vmem:[%s0 + $0x70] sm:$0xff]
    %v37 = vld [vmem:[%s0 + $0x78] sm:$0xff]
    %v38 = vld [vmem:[%s1] sm:$0xff]
    %v39 = vld [vmem:[%s1 + $0x8] sm:$0xff]
    %v40 = vld [vmem:[%s2] sm:$0x1]
    %v42 = vlaneseq
    %v43 = vshrl.u32 %v42, 7
    %v44 = vsub.s32 0, %v43
    %v45 = vrot.slane %v40, %v44
    %vm47 = vcmask 130048
    %v49 = vsel %vm47, %v22, 0
    %v52 = vsel %vm47, %v23, 0
    %v55 = vsel %vm47, %v24, 0
    %v58 = vsel %vm47, %v25, 0
    %v61 = vsel %vm47, %v26, 0
    %v64 = vsel %vm47, %v27, 0
    %v67 = vsel %vm47, %v28, 0
    %v70 = vsel %vm47, %v29, 0
    %v73 = vsel %vm47, %v30, 0
    %v76 = vsel %vm47, %v31, 0
    %v79 = vsel %vm47, %v32, 0
    %v82 = vsel %vm47, %v33, 0
    %v85 = vsel %vm47, %v34, 0
    %v88 = vsel %vm47, %v35, 0
    %v91 = vsel %vm47, %v36, 0
    %v94 = vsel %vm47, %v37, 0
    %96 = vmatprep.subr.mxu0 0.0
    %97 = vmatpush1.msra.mxu0 %v38
    %98 = vmatprep.subr.mxu0 0.0
    %99 = vmatpush1.msra.mxu0 %v39
    %100 = vmatprep.subr.mxu0 0.0
    %101 = vmatpush1.msra.mxu0 0.0
    %102 = vmatprep.subr.mxu0 0.0
    %103 = vmatpush1.msra.mxu0 0.0
    %104 = vmatprep.subr.mxu0 0.0
    %105 = vmatpush1.msra.mxu0 0.0
    %106 = vmatprep.subr.mxu0 0.0
    %107 = vmatpush1.msra.mxu0 0.0
    %108 = vmatprep.subr.mxu0 0.0
    %109 = vmatpush1.msra.mxu0 0.0
    %110 = vmatprep.subr.mxu0 0.0
    %111 = vmatpush1.msra.mxu0 0.0
    %112 = vmatprep.subr.mxu0 0.0
    %113 = vmatpush1.msra.mxu0 0.0
    %114 = vmatprep.subr.mxu0 0.0
    %115 = vmatpush1.msra.mxu0 0.0
    %116 = vmatprep.subr.mxu0 0.0
    %117 = vmatpush1.msra.mxu0 0.0
    %118 = vmatprep.subr.mxu0 0.0
    %119 = vmatpush1.msra.mxu0 0.0
    %120 = vmatprep.subr.mxu0 0.0
    %121 = vmatpush1.msra.mxu0 0.0
    %122 = vmatprep.subr.mxu0 0.0
    %123 = vmatpush1.msra.mxu0 0.0
    %124 = vmatprep.subr.mxu0 0.0
    %125 = vmatpush1.msra.mxu0 0.0
    %126 = vmatprep.subr.mxu0 0.0
    %127 = vmatpush1.msra.mxu0 0.0
    %128 = vmatprep.subr.mxu0 0.0
    %129 = vmatpush1.msra.mxu0 0.0
    %130 = vmatprep.subr.mxu0 0.0
    %131 = vmatpush1.msra.mxu0 0.0
    %132 = vmatprep.subr.mxu0 0.0
    %133 = vmatpush1.msra.mxu0 0.0
    %134 = vmatprep.subr.mxu0 0.0
    %135 = vmatpush1.msra.mxu0 0.0
    %136 = vmatprep.subr.mxu0 0.0
    %137 = vmatpush1.msra.mxu0 0.0
    %138 = vmatprep.subr.mxu0 0.0
    %139 = vmatpush1.msra.mxu0 0.0
    %140 = vmatprep.subr.mxu0 0.0
    %141 = vmatpush1.msra.mxu0 0.0
    %142 = vmatprep.subr.mxu0 0.0
    %143 = vmatpush1.msra.mxu0 0.0
    %144 = vmatprep.subr.mxu0 0.0
    %145 = vmatpush1.msra.mxu0 0.0
    %146 = vmatprep.subr.mxu0 0.0
    %147 = vmatpush1.msra.mxu0 0.0
    %148 = vmatprep.subr.mxu0 0.0
    %149 = vmatpush1.msra.mxu0 0.0
    %150 = vmatprep.subr.mxu0 0.0
    %151 = vmatpush1.msra.mxu0 0.0
    %152 = vmatprep.subr.mxu0 0.0
    %153 = vmatpush1.msra.mxu0 0.0
    %154 = vmatprep.subr.mxu0 0.0
    %155 = vmatpush1.msra.mxu0 0.0
    %156 = vmatprep.subr.mxu0 0.0
    %157 = vmatpush1.msra.mxu0 0.0
    %158 = vmatprep.subr.mxu0 0.0
    %159 = vmatpush1.msra.mxu0 0.0
    %160 = vmatprep.mubr.f32.mxu0 0.0
    %161 = vmatmul.mubr.f32.gmra.mrb[0].mxu0 %v49
    %v162 = vpop.f32.mrb[0].mxu0
    %v163 = vadd.f32 %v45, %v162
    %v164 = vpop.f32.mrb[0].mxu0
    %165 = vmatprep.mubr.f32.mxu0 0.0
    %166 = vmatmul.mubr.f32.gmra.mrb[0].mxu0 %v52
    %v167 = vpop.f32.mrb[0].mxu0
    %v168 = vadd.f32 %v45, %v167
    %v169 = vpop.f32.mrb[0].mxu0
    %170 = vmatprep.mubr.f32.mxu0 0.0
    %171 = vmatmul.mubr.f32.gmra.mrb[0].mxu0 %v55
    %v172 = vpop.f32.mrb[0].mxu0
    %v173 = vadd.f32 %v45, %v172
    %v174 = vpop.f32.mrb[0].mxu0
    %175 = vmatprep.mubr.f32.mxu0 0.0
    %176 = vmatmul.mubr.f32.gmra.mrb[0].mxu0 %v58
    %v177 = vpop.f32.mrb[0].mxu0
    %v178 = vadd.f32 %v45, %v177
    %v179 = vpop.f32.mrb[0].mxu0
    %180 = vmatprep.mubr.f32.mxu0 0.0
    %181 = vmatmul.mubr.f32.gmra.mrb[0].mxu0 %v61
    %v182 = vpop.f32.mrb[0].mxu0
    %v183 = vadd.f32 %v45, %v182
    %v184 = vpop.f32.mrb[0].mxu0
    %185 = vmatprep.mubr.f32.mxu0 0.0
    %186 = vmatmul.mubr.f32.gmra.mrb[0].mxu0 %v64
    %v187 = vpop.f32.mrb[0].mxu0
    %v188 = vadd.f32 %v45, %v187
    %v189 = vpop.f32.mrb[0].mxu0
    %190 = vmatprep.mubr.f32.mxu0 0.0
    %191 = vmatmul.mubr.f32.gmra.mrb[0].mxu0 %v67
    %v192 = vpop.f32.mrb[0].mxu0
    %v193 = vadd.f32 %v45, %v192
    %v194 = vpop.f32.mrb[0].mxu0
    %195 = vmatprep.mubr.f32.mxu0 0.0
    %196 = vmatmul.mubr.f32.gmra.mrb[0].mxu0 %v70
    %v197 = vpop.f32.mrb[0].mxu0
    %v198 = vadd.f32 %v45, %v197
    %v199 = vpop.f32.mrb[0].mxu0
    %200 = vmatprep.mubr.f32.mxu0 0.0
    %201 = vmatmul.mubr.f32.gmra.mrb[0].mxu0 %v73
    %v202 = vpop.f32.mrb[0].mxu0
    %v203 = vadd.f32 %v45, %v202
    %v204 = vpop.f32.mrb[0].mxu0
    %205 = vmatprep.mubr.f32.mxu0 0.0
    %206 = vmatmul.mubr.f32.gmra.mrb[0].mxu0 %v76
    %v207 = vpop.f32.mrb[0].mxu0
    %v208 = vadd.f32 %v45, %v207
    %v209 = vpop.f32.mrb[0].mxu0
    %210 = vmatprep.mubr.f32.mxu0 0.0
    %211 = vmatmul.mubr.f32.gmra.mrb[0].mxu0 %v79
    %v212 = vpop.f32.mrb[0].mxu0
    %v213 = vadd.f32 %v45, %v212
    %v214 = vpop.f32.mrb[0].mxu0
    %215 = vmatprep.mubr.f32.mxu0 0.0
    %216 = vmatmul.mubr.f32.gmra.mrb[0].mxu0 %v82
    %v217 = vpop.f32.mrb[0].mxu0
    %v218 = vadd.f32 %v45, %v217
    %v219 = vpop.f32.mrb[0].mxu0
    %220 = vmatprep.mubr.f32.mxu0 0.0
    %221 = vmatmul.mubr.f32.gmra.mrb[0].mxu0 %v85
    %v222 = vpop.f32.mrb[0].mxu0
    %v223 = vadd.f32 %v45, %v222
    %v224 = vpop.f32.mrb[0].mxu0
    %225 = vmatprep.mubr.f32.mxu0 0.0
    %226 = vmatmul.mubr.f32.gmra.mrb[0].mxu0 %v88
    %v227 = vpop.f32.mrb[0].mxu0
    %v228 = vadd.f32 %v45, %v227
    %v229 = vpop.f32.mrb[0].mxu0
    %230 = vmatprep.mubr.f32.mxu0 0.0
    %231 = vmatmul.mubr.f32.gmra.mrb[0].mxu0 %v91
    %v232 = vpop.f32.mrb[0].mxu0
    %v233 = vadd.f32 %v45, %v232
    %v234 = vpop.f32.mrb[0].mxu0
    %235 = vmatprep.mubr.f32.mxu0 0.0
    %236 = vmatmul.mubr.f32.gmra.mrb[0].mxu0 %v94
    %v237 = vpop.f32.mrb[0].mxu0
    %v238 = vadd.f32 %v45, %v237
    %v239 = vpop.f32.mrb[0].mxu0
    %240 = vdwg.mxu0
    %v241 = vmax.f32 %v163, 0.0
    %v242 = vmax.f32 %v168, 0.0
    %v243 = vmax.f32 %v173, 0.0
    %v244 = vmax.f32 %v178, 0.0
    %v245 = vmax.f32 %v183, 0.0
    %v246 = vmax.f32 %v188, 0.0
    %v247 = vmax.f32 %v193, 0.0
    %v248 = vmax.f32 %v198, 0.0
    %v249 = vmax.f32 %v203, 0.0
    %v250 = vmax.f32 %v208, 0.0
    %v251 = vmax.f32 %v213, 0.0
    %v252 = vmax.f32 %v218, 0.0
    %v253 = vmax.f32 %v223, 0.0
    %v254 = vmax.f32 %v228, 0.0
    %v255 = vmax.f32 %v233, 0.0
    %v256 = vmax.f32 %v238, 0.0
    %v257 = vld [vmem:[%s3] sm:$0x1]
    %v259 = vlaneseq
    %v260 = vshrl.u32 %v259, 7
    %v261 = vsub.s32 0, %v260
    %v262 = vrot.slane %v257, %v261
    %v264 = vmul.f32 %v241, %v262
    %v265 = vmul.f32 %v242, %v262
    %v266 = vmul.f32 %v243, %v262
    %v267 = vmul.f32 %v244, %v262
    %v268 = vmul.f32 %v245, %v262
    %v269 = vmul.f32 %v246, %v262
    %v270 = vmul.f32 %v247, %v262
    %v271 = vmul.f32 %v248, %v262
    %v272 = vmul.f32 %v249, %v262
    %v273 = vmul.f32 %v250, %v262
    %v274 = vmul.f32 %v251, %v262
    %v275 = vmul.f32 %v252, %v262
    %v276 = vmul.f32 %v253, %v262
    %v277 = vmul.f32 %v254, %v262
    %v278 = vmul.f32 %v255, %v262
    %v279 = vmul.f32 %v256, %v262
    %vm280 = vcmask 261120
    %v281 = vsel %vm280, %v264, 0.0
    %282 = vadd.xlane.f32.xlu0 %v281
    %v283 = vpop.xlane.xlu0 %282
    %v284 = vsel %vm280, %v265, 0.0
    %285 = vadd.xlane.f32.xlu0 %v284
    %v286 = vpop.xlane.xlu0 %285
    %v287 = vsel %vm280, %v266, 0.0
    %288 = vadd.xlane.f32.xlu0 %v287
    %v289 = vpop.xlane.xlu0 %288
    %v290 = vsel %vm280, %v267, 0.0
    %291 = vadd.xlane.f32.xlu0 %v290
    %v292 = vpop.xlane.xlu0 %291
    %v293 = vsel %vm280, %v268, 0.0
    %294 = vadd.xlane.f32.xlu0 %v293
    %v295 = vpop.xlane.xlu0 %294
    %v296 = vsel %vm280, %v269, 0.0
    %297 = vadd.xlane.f32.xlu0 %v296
    %v298 = vpop.xlane.xlu0 %297
    %v299 = vsel %vm280, %v270, 0.0
    %300 = vadd.xlane.f32.xlu0 %v299
    %v301 = vpop.xlane.xlu0 %300
    %v302 = vsel %vm280, %v271, 0.0
    %303 = vadd.xlane.f32.xlu0 %v302
    %v304 = vpop.xlane.xlu0 %303
    %v305 = vsel %vm280, %v272, 0.0
    %306 = vadd.xlane.f32.xlu0 %v305
    %v307 = vpop.xlane.xlu0 %306
    %v308 = vsel %vm280, %v273, 0.0
    %309 = vadd.xlane.f32.xlu0 %v308
    %v310 = vpop.xlane.xlu0 %309
    %v311 = vsel %vm280, %v274, 0.0
    %312 = vadd.xlane.f32.xlu0 %v311
    %v313 = vpop.xlane.xlu0 %312
    %v314 = vsel %vm280, %v275, 0.0
    %315 = vadd.xlane.f32.xlu0 %v314
    %v316 = vpop.xlane.xlu0 %315
    %v317 = vsel %vm280, %v276, 0.0
    %318 = vadd.xlane.f32.xlu0 %v317
    %v319 = vpop.xlane.xlu0 %318
    %v320 = vsel %vm280, %v277, 0.0
    %321 = vadd.xlane.f32.xlu0 %v320
    %v322 = vpop.xlane.xlu0 %321
    %v323 = vsel %vm280, %v278, 0.0
    %324 = vadd.xlane.f32.xlu0 %v323
    %v325 = vpop.xlane.xlu0 %324
    %v326 = vsel %vm280, %v279, 0.0
    %327 = vadd.xlane.f32.xlu0 %v326
    %v328 = vpop.xlane.xlu0 %327
    %s329 = sld [smem:[#allocation2]]
    %v330 = vstv %s329
    %v331 = vadd.f32 %v283, %v330
    %v332 = vadd.f32 %v286, %v330
    %v333 = vadd.f32 %v289, %v330
    %v334 = vadd.f32 %v292, %v330
    %v335 = vadd.f32 %v295, %v330
    %v336 = vadd.f32 %v298, %v330
    %v337 = vadd.f32 %v301, %v330
    %v338 = vadd.f32 %v304, %v330
    %v339 = vadd.f32 %v307, %v330
    %v340 = vadd.f32 %v310, %v330
    %v341 = vadd.f32 %v313, %v330
    %v342 = vadd.f32 %v316, %v330
    %v343 = vadd.f32 %v319, %v330
    %v344 = vadd.f32 %v322, %v330
    %v345 = vadd.f32 %v325, %v330
    %v346 = vadd.f32 %v328, %v330
    %v363 = vlaneseq
    %v364 = vand.u32 %v363, 127
    %v365 = vlaneseq
    %v366 = vshrl.u32 %v365, 7
    %v367 = vsub.s32 %v364, %v366
    %v368 = vrot.slane %v331, %v367
    %v369 = vadd.s32 %v364, 4294967288
    %v370 = vlaneseq
    %v371 = vshrl.u32 %v370, 7
    %v372 = vsub.s32 %v369, %v371
    %v373 = vrot.slane %v332, %v372
    %vm374 = vcmask 130112
    %v375 = vsel %vm374, %v373, %v368
    %v376 = vadd.s32 %v364, 4294967280
    %v377 = vlaneseq
    %v378 = vshrl.u32 %v377, 7
    %v379 = vsub.s32 %v376, %v378
    %v380 = vrot.slane %v333, %v379
    %vm381 = vcmask 195712
    %v382 = vsel %vm381, %v380, %v375
    %v383 = vadd.s32 %v364, 4294967272
    %v384 = vlaneseq
    %v385 = vshrl.u32 %v384, 7
    %v386 = vsub.s32 %v383, %v385
    %v387 = vrot.slane %v334, %v386
    %vm388 = vcmask 261312
    %v389 = vsel %vm388, %v387, %v382
    %v390 = vadd.s32 %v364, 4294967264
    %v391 = vlaneseq
    %v392 = vshrl.u32 %v391, 7
    %v393 = vsub.s32 %v390, %v392
    %v394 = vrot.slane %v335, %v393
    %vm395 = vcmask 326912
    %v396 = vsel %vm395, %v394, %v389
    %v397 = vadd.s32 %v364, 4294967256
    %v398 = vlaneseq
    %v399 = vshrl.u32 %v398, 7
    %v400 = vsub.s32 %v397, %v399
    %v401 = vrot.slane %v336, %v400
    %vm402 = vcmask 392512
    %v403 = vsel %vm402, %v401, %v396
    %v404 = vadd.s32 %v364, 4294967248
    %v405 = vlaneseq
    %v406 = vshrl.u32 %v405, 7
    %v407 = vsub.s32 %v404, %v406
    %v408 = vrot.slane %v337, %v407
    %vm409 = vcmask 458112
    %v410 = vsel %vm409, %v408, %v403
    %v411 = vadd.s32 %v364, 4294967240
    %v412 = vlaneseq
    %v413 = vshrl.u32 %v412, 7
    %v414 = vsub.s32 %v411, %v413
    %v415 = vrot.slane %v338, %v414
    %vm416 = vcmask 523712
    %v417 = vsel %vm416, %v415, %v410
    %v418 = vadd.s32 %v364, 4294967232
    %v419 = vlaneseq
    %v420 = vshrl.u32 %v419, 7
    %v421 = vsub.s32 %v418, %v420
    %v422 = vrot.slane %v339, %v421
    %vm423 = vcmask 589312
    %v424 = vsel %vm423, %v422, %v417
    %v425 = vadd.s32 %v364, 4294967224
    %v426 = vlaneseq
    %v427 = vshrl.u32 %v426, 7
    %v428 = vsub.s32 %v425, %v427
    %v429 = vrot.slane %v340, %v428
    %vm430 = vcmask 654912
    %v431 = vsel %vm430, %v429, %v424
    %v432 = vadd.s32 %v364, 4294967216
    %v433 = vlaneseq
    %v434 = vshrl.u32 %v433, 7
    %v435 = vsub.s32 %v432, %v434
    %v436 = vrot.slane %v341, %v435
    %vm437 = vcmask 720512
    %v438 = vsel %vm437, %v436, %v431
    %v439 = vadd.s32 %v364, 4294967208
    %v440 = vlaneseq
    %v441 = vshrl.u32 %v440, 7
    %v442 = vsub.s32 %v439, %v441
    %v443 = vrot.slane %v342, %v442
    %vm444 = vcmask 786112
    %v445 = vsel %vm444, %v443, %v438
    %v446 = vadd.s32 %v364, 4294967200
    %v447 = vlaneseq
    %v448 = vshrl.u32 %v447, 7
    %v449 = vsub.s32 %v446, %v448
    %v450 = vrot.slane %v343, %v449
    %vm451 = vcmask 851712
    %v452 = vsel %vm451, %v450, %v445
    %v453 = vadd.s32 %v364, 4294967192
    %v454 = vlaneseq
    %v455 = vshrl.u32 %v454, 7
    %v456 = vsub.s32 %v453, %v455
    %v457 = vrot.slane %v344, %v456
    %vm458 = vcmask 917312
    %v459 = vsel %vm458, %v457, %v452
    %v460 = vadd.s32 %v364, 4294967184
    %v461 = vlaneseq
    %v462 = vshrl.u32 %v461, 7
    %v463 = vsub.s32 %v460, %v462
    %v464 = vrot.slane %v345, %v463
    %vm465 = vcmask 982912
    %v466 = vsel %vm465, %v464, %v459
    %v467 = vadd.s32 %v364, 4294967176
    %v468 = vlaneseq
    %v469 = vshrl.u32 %v468, 7
    %v470 = vsub.s32 %v467, %v469
    %v471 = vrot.slane %v346, %v470
    %vm472 = vcmask 1048512
    %v473 = vsel %vm472, %v471, %v466
    %475 = vst [vmem:[#allocation3] sm:$0x1] %v473
    // Predicated region
    $region22: #{tpu_custom_call.1} parent=1 // pred_check
      _
    $region23: #{tpu_custom_call.1} parent=1 // pred_check_branch
      %477 = sbr.rel (0) target = $region25
    $region24: #{tpu_custom_call.1} parent=1 // pred_region
      %s479 = ssub.s32 16, 16
      %480 = vsyncadd [#allocation4], %s479
      %s482 = sshll.u32 [#allocation3], 4
      %s483 = int_to_ptr.vmem [resolvable:$true] %s482
      %485 = dma.vmem_to_hbm [thread:$0]  %s483, 16, %s5, [#allocation4]
    $region25: #{tpu_custom_call.1} parent=1 // pred_fallthru
      _
    // Predicated region
    $region26: #{tpu_custom_call.1} parent=1 // pred_check
      _
    $region27: #{tpu_custom_call.1} parent=1 // pred_check_branch
      %487 = sbr.rel (0) target = $region29
    $region28: #{tpu_custom_call.1} parent=1 // pred_region
      %488 = dma.done [#allocation4], 16
    $region29: #{tpu_custom_call.1} parent=1 // pred_fallthru
      _
    %489 = vsyncpa [#allocation4], 1

</llo_original>
